<compile_context>
chip_gen: v7x
topology: tpu7x:2x2x1
jax: 0.10.0
libtpu: 0.0.40
codegen_flags: <defaults>
</compile_context>

<pallas_src>
from functools import partial

import jax
import jax.numpy as jnp
from jax.experimental import pallas as pl
from jax.experimental.pallas import tpu as pltpu


# --------------------------------------------------------------------------
# Fused Pallas kernel: conv(3x3)+ReLU -> tanh/mu heads, one wide matmul/step
# --------------------------------------------------------------------------

def _spade_gen_kernel(p_ref, w1_ref, w2_ref, fake_ref, mu_ref):
    # p_ref  : (1, K, M) bf16  im2col patches for NB batch elems x D slices,
    #                          M = NB*D*H*W on the lane axis.
    # w1_ref : (C1, K)   bf16  fused conv weights (cond rows, conv bias and a
    #                          constant-1 channel folded in), C1 = ngf + 1.
    # w2_ref : (2, C1)   bf16  1x1 heads [mu, residual]; head biases ride in
    #                          the last column (multiplied by the constant-1
    #                          channel of h).
    # fake_ref / mu_ref : (1, 1, M) f32 lane-dense output slabs.
    h = jnp.dot(w1_ref[...], p_ref[0],
                preferred_element_type=jnp.float32)           # (C1, M) on MXU
    h = jnp.maximum(h, 0.0).astype(w2_ref.dtype)              # ReLU -> bf16
    y = jnp.dot(w2_ref[...], h,
                preferred_element_type=jnp.float32)           # (2, M) on MXU
    mu_ref[0, 0:1, :] = y[0:1, :]
    fake_ref[0, 0:1, :] = jnp.tanh(y[0:1, :] + y[1:2, :])


def fused_spade_generator(patches, w1_fused, w2_fused):
    """patches: (Gsteps, K, M) bf16; w1_fused: (C1, K) bf16; w2_fused: (2, C1)
    bf16.  Returns (fake, fake_mu), each (Gsteps, 1, M) f32."""
    Gsteps, K, M = patches.shape
    C1 = w1_fused.shape[0]
    # TODO(synk): for realistic SPADE sizes (H, W >= 256) replace the host-side
    # im2col with in-kernel halo-tile DMA (memory_space=pl.ANY) + lane-strip
    # tiling of M (Ltile multiple of 128), and set vmem_limit_bytes explicitly
    # (v7x VMEM is 64 MiB); at the toy sizes here a full-M block fits easily.
    fake, mu = pl.pallas_call(
        _spade_gen_kernel,
        out_shape=(jax.ShapeDtypeStruct((Gsteps, 1, M), jnp.float32),
                   jax.ShapeDtypeStruct((Gsteps, 1, M), jnp.float32)),
        grid=(Gsteps,),
        in_specs=[
            pl.BlockSpec((1, K, M), lambda g: (g, 0, 0)),
            pl.BlockSpec((C1, K), lambda g: (0, 0)),
            pl.BlockSpec((2, C1), lambda g: (0, 0)),
        ],
        out_specs=(pl.BlockSpec((1, 1, M), lambda g: (g, 0, 0)),
                   pl.BlockSpec((1, 1, M), lambda g: (g, 0, 0))),
        compiler_params=pltpu.CompilerParams(
            dimension_semantics=("parallel",)),
    )(patches, w1_fused, w2_fused)
    return fake, mu


# --------------------------------------------------------------------------
# Host-side im2col (bf16, built directly in kernel layout)
# --------------------------------------------------------------------------

def _build_patches(mask, noise0, power, frames, z_per_slice, G, NB):
    """mask, noise0: (N, Z, H, W) f32; power/frames: (N,); z_per_slice: (N, D).

    Returns (Gsteps, K, NB*D*H*W) bf16, Gsteps = N // NB, K = 9*2G + 4:
      rows [0, 9*2G)      : 3x3 im2col taps of the G mask + G noise z-planes
                            of each slice window (row index = c*9 + kh*3 + kw),
      rows 9*2G + {0,1,2} : constant power / frames / z_pos_i rows,
      row  9*2G + 3       : constant ones row (carries conv bias + head bias).
    """
    N, Z, H, W = mask.shape
    D = z_per_slice.shape[1]
    L = H * W
    wins = [jnp.concatenate([mask[:, i:i + G], noise0[:, i:i + G]], axis=1)
            for i in range(D)]                                    # D x (N, 2G, H, W)
    x = jnp.stack(wins, axis=1).astype(jnp.bfloat16)              # (N, D, 2G, H, W)
    xp = jnp.pad(x, ((0, 0), (0, 0), (0, 0), (1, 1), (1, 1)))
    taps = [xp[:, :, :, kh:kh + H, kw:kw + W]
            for kh in range(3) for kw in range(3)]                # 9 x (N, D, 2G, H, W)
    pat = jnp.stack(taps, axis=3).reshape(N, D, 2 * G * 9, L)
    ones = jnp.ones((N, D, 1, L), jnp.bfloat16)
    pw = ones * power.reshape(N, 1, 1, 1).astype(jnp.bfloat16)
    fr = ones * frames.reshape(N, 1, 1, 1).astype(jnp.bfloat16)
    zz = ones * z_per_slice.reshape(N, D, 1, 1).astype(jnp.bfloat16)
    patches = jnp.concatenate([pat, pw, fr, zz, ones], axis=2)    # (N, D, K, L)
    K = patches.shape[2]
    Gsteps = N // NB
    patches = patches.reshape(Gsteps, NB, D, K, L)
    patches = jnp.transpose(patches, (0, 3, 1, 2, 4))             # (Gsteps, K, NB, D, L)
    return patches.reshape(Gsteps, K, NB * D * L)


@partial(jax.jit, static_argnames=("G", "NB"))
def _generate_fake_impl(mask, noise0, power, frames, z_per_slice,
                        w1_fused, w2_fused, *, G, NB):
    N, _, H, W = mask.shape
    D = z_per_slice.shape[1]
    patches = _build_patches(mask, noise0, power, frames, z_per_slice, G, NB)
    fake, mu = fused_spade_generator(patches, w1_fused, w2_fused)
    # (Gsteps, 1, NB*D*L) -> (N, D, L); lane ordering is (n_local, d, l)
    fake = fake.reshape(N, D, H * W)
    mu = mu.reshape(N, D, H * W)
    return fake, mu


# --------------------------------------------------------------------------
# Model wrapper (mirrors BioSPADEModel's inference forward path)
# --------------------------------------------------------------------------

class BioSPADEModelPallas:
    def __init__(self, opt, key):
        self.opt = opt
        self.num_up_layers = opt.num_up_layers   # stand-in for compute_latent_vector_size
        G = opt.in_Gslices
        cin = 2 * G + 3                          # mask + noise slices + (power, frames, z)
        chid = opt.ngf
        K = 2 * G * 9 + 4
        k1, k2 = jax.random.split(key, 2)
        # deterministic synthetic generator parameters (stand-in for net_G)
        self.w1 = 0.1 * jax.random.normal(k1, (3, 3, cin, chid), jnp.float32)
        self.b1 = 0.01 * jnp.ones((1, chid), jnp.float32)
        self.w2 = 0.1 * jax.random.normal(k2, (2, chid), jnp.float32)
        self.b2 = jnp.zeros((2,), jnp.float32)

        # ---- fold weights for the fused kernel (done once, host side) ----
        # spatial taps: (2G*9, chid) with row = c*9 + kh*3 + kw
        w_sp = jnp.transpose(self.w1[:, :, :2 * G, :],
                             (2, 0, 1, 3)).reshape(2 * G * 9, chid)
        # spatially-constant cond channels: summing the 9 taps is exact for
        # constant inputs (the stand-in treats cond channels as constant
        # everywhere instead of zero-padded at the image border).
        w_cond = jnp.sum(self.w1[:, :, 2 * G:, :], axis=(0, 1))    # (3, chid)
        w_full = jnp.concatenate([w_sp, w_cond, self.b1], axis=0)  # (K, chid)
        w1_fused = jnp.transpose(w_full)                           # (chid, K)
        # Extra constant channel: weight 1.0 on the ones row only, so ReLU of
        # it is exactly 1.0 and the head biases can ride in an extra column of
        # w2 (no SMEM bias operand, no broadcast adds in the kernel).
        bias_row = jnp.zeros((1, K), jnp.float32).at[0, K - 1].set(1.0)
        self.w1_fused = jnp.concatenate(
            [w1_fused, bias_row], axis=0).astype(jnp.bfloat16)           # (chid+1, K)
        self.w2_fused = jnp.concatenate(
            [self.w2, self.b2[:, None]], axis=1).astype(jnp.bfloat16)    # (2, chid+1)

    # ---- preprocess_input (device-branch semantics: views, noise, power/min) ----
    def preprocess_input(self, data, do_target=False):
        sz = data['mesh_semantics'].shape
        dim_concat = sz[0] * sz[1]
        z_sz = sz[-3]
        xy_sz = sz[-2:]
        self.X_2D = (dim_concat, z_sz, *xy_sz)
        self.X_3D = (dim_concat, 1, z_sz, *xy_sz)
        self.Y_2D = (dim_concat, z_sz - self.opt.in_Gslices + 1, *xy_sz)
        self.Y_3D = (dim_concat, 1, z_sz - self.opt.in_Gslices + 1, *xy_sz)
        self.GT = (dim_concat, *xy_sz)

        data = dict(data)
        data['mesh_semantics'] = data['mesh_semantics'].reshape(self.X_2D)
        if 'noise' not in data:
            keys = jax.random.split(jax.random.PRNGKey(1), self.num_up_layers + 1)
            noise = []
            for i in range(self.num_up_layers + 1):
                x_sz = xy_sz[0] // 2 ** i
                y_sz = xy_sz[1] // 2 ** i
                noise.append(jax.random.normal(
                    keys[i], (*self.X_2D[:-2], x_sz, y_sz), jnp.float32))
            data['noise'] = noise
        if 'power' in data:
            min_val = min(self.opt.powers)
            if min_val == 0:
                min_val = 1.0
                data['power'] = data['power'] + 1.0
            data['power'] = data['power'] / min_val
        if 'z_pos' not in data:
            data['z_pos'] = None
        # TODO(synk): do_target path (max-proj + F.max_pool2d ignore mask) is only
        # used by the training modes, which require the external nets; skipped.
        return data

    # ---- generate_fake: identical slicing / reshape semantics, fused kernel ----
    def generate_fake(self, mask, noise, power, frames, z_pos):
        mask = mask.reshape(self.X_2D)                     # (N, Z, H, W)
        G = self.opt.in_Gslices
        in_Dslices = mask.shape[1] - G + 1
        N = mask.shape[0]
        power = power.reshape(N).astype(jnp.float32)
        frames = frames.reshape(N).astype(jnp.float32)
        if z_pos is not None:
            z_per_slice = (z_pos.reshape(N, 1).astype(jnp.float32)
                           + self.opt.delta_z
                           * jnp.arange(in_Dslices, dtype=jnp.float32)[None, :])
        else:
            z_per_slice = jnp.zeros((N, in_Dslices), jnp.float32)
        # TODO(synk): the real SPADE generator (multi-scale noise, upsampling
        # stack) is external; this deterministic stand-in uses only noise[0].
        noise0 = noise[0].astype(jnp.float32)
        # >= 2 grid steps when possible so both v7x TensorCores get work; on
        # v5e/v6e the grid is a serial loop, so fewer & larger steps win.
        NB = N // 2 if (N % 2 == 0 and N >= 2) else 1
        fake, fake_mu = _generate_fake_impl(
            mask.astype(jnp.float32), noise0, power, frames, z_per_slice,
            self.w1_fused, self.w2_fused, G=G, NB=NB)      # (N, D, H*W) each
        return fake.reshape(self.Y_3D), fake_mu.reshape(self.Y_3D)

    def forward(self, data, mode):
        if mode != 'inference':
            # TODO(synk): 'G' / 'Dconv' / 'Dgram' / 'Seg' training modes need the
            # external discriminators, segmenter and GAN/VGG/style losses.
            raise ValueError("only 'inference' mode is implemented")
        data = self.preprocess_input(data, False)
        fake, fake_mu = self.generate_fake(
            data['mesh_semantics'], data['noise'], data['power'],
            data['frames'], data['z_pos'])
        return fake, fake_mu


# --------------------------------------------------------------------------
# Driver
# --------------------------------------------------------------------------

if __name__ == "__main__":
    class Opt:
        in_Gslices = 3
        in_dim = '3D'
        delta_z = 0.5
        powers = (1.0, 2.0)
        num_up_layers = 2
        ngf = 16

    key = jax.random.PRNGKey(0)
    k_mesh, k_noise, k_param = jax.random.split(key, 3)

    # mesh_semantics is (B, T, Z, H, W); preprocess flattens to (B*T, Z, H, W)
    B, T, Z, H, W = 2, 2, 5, 16, 16
    mesh = (jax.random.uniform(k_mesh, (B, T, Z, H, W), jnp.float32) > 0.8
            ).astype(jnp.float32)
    noise_keys = jax.random.split(k_noise, Opt.num_up_layers + 1)
    noise = [jax.random.normal(noise_keys[i],
                               (B * T, Z, H // 2 ** i, W // 2 ** i), jnp.float32)
             for i in range(Opt.num_up_layers + 1)]
    power = jnp.full((B * T,), 2.0, jnp.float32)
    frames = jnp.full((B * T,), 4.0, jnp.float32)
    z_pos = jnp.arange(B * T, dtype=jnp.float32)

    model = BioSPADEModelPallas(Opt(), k_param)
    data = {'mesh_semantics': mesh, 'noise': noise, 'power': power,
            'frames': frames, 'z_pos': z_pos}

    fake, fake_mu = model.forward(data, 'inference')
    jax.block_until_ready((fake, fake_mu))

    expected = (B * T, 1, Z - Opt.in_Gslices + 1, H, W)   # Y_3D
    assert fake.shape == expected, fake.shape
    assert fake_mu.shape == expected, fake_mu.shape
    assert bool(jnp.all(jnp.isfinite(fake))) and bool(jnp.all(jnp.isfinite(fake_mu)))
    print("KERNEL_OK")
</pallas_src>

<mosaic_0001>
module attributes {stable_mosaic.version = 11 : i64} {
  func.func @_spade_gen_kernel(%arg0: i32, %arg1: memref<1x58x1536xbf16, #tpu.memory_space<vmem>>, %arg2: memref<17x58xbf16, #tpu.memory_space<vmem>>, %arg3: memref<2x17xbf16, #tpu.memory_space<vmem>>, %arg4: memref<1x1x1536xf32, #tpu.memory_space<vmem>>, %arg5: memref<1x1x1536xf32, #tpu.memory_space<vmem>>) attributes {dimension_semantics = [#tpu.dimension_semantics<parallel>], iteration_bounds = array<i64: 2>, scalar_prefetch = 0 : i64, scratch_operands = 0 : i64, tpu.core_type = #tpu.core_type<tc>, window_params = [{transform_indices = @transform_0, window_bounds = array<i64: 1, 58, 1536>}, {pipeline_mode = #tpu.pipeline_mode<synchronous>, transform_indices = @transform_1, window_bounds = array<i64: 17, 58>}, {pipeline_mode = #tpu.pipeline_mode<synchronous>, transform_indices = @transform_2, window_bounds = array<i64: 2, 17>}, {transform_indices = @transform_3, window_bounds = array<i64: 1, 1, 1536>}, {transform_indices = @transform_4, window_bounds = array<i64: 1, 1, 1536>}]} {
    %c0 = arith.constant 0 : index
    %c0_0 = arith.constant 0 : index
    %0 = vector.load %arg2[%c0, %c0_0] : memref<17x58xbf16, #tpu.memory_space<vmem>>, vector<17x58xbf16>
    %c0_1 = arith.constant 0 : index
    %c0_2 = arith.constant 0 : index
    %c0_3 = arith.constant 0 : index
    %1 = vector.load %arg1[%c0_1, %c0_2, %c0_3] : memref<1x58x1536xbf16, #tpu.memory_space<vmem>>, vector<1x58x1536xbf16>
    %2 = vector.shape_cast %1 : vector<1x58x1536xbf16> to vector<58x1536xbf16>
    %cst = arith.constant dense<0.000000e+00> : vector<17x1536xf32>
    %3 = tpu.matmul %0, %2, %cst {dimension_numbers = #tpu.dot_dimension_numbers<[1], [0], [0], [1], [0, 0, 1, 1], [], []>} : vector<17x58xbf16>, vector<58x1536xbf16>, vector<17x1536xf32> -> vector<17x1536xf32>
    %cst_4 = arith.constant 0.000000e+00 : f32
    %4 = vector.broadcast %cst_4 : f32 to vector<17x1536xf32>
    %5 = arith.maximumf %3, %4 : vector<17x1536xf32>
    %6 = arith.truncf %5 : vector<17x1536xf32> to vector<17x1536xbf16>
    %c0_5 = arith.constant 0 : index
    %c0_6 = arith.constant 0 : index
    %7 = vector.load %arg3[%c0_5, %c0_6] : memref<2x17xbf16, #tpu.memory_space<vmem>>, vector<2x17xbf16>
    %cst_7 = arith.constant dense<0.000000e+00> : vector<2x1536xf32>
    %8 = tpu.matmul %7, %6, %cst_7 {dimension_numbers = #tpu.dot_dimension_numbers<[1], [0], [0], [1], [0, 0, 1, 1], [], []>} : vector<2x17xbf16>, vector<17x1536xbf16>, vector<2x1536xf32> -> vector<2x1536xf32>
    %9 = vector.extract_strided_slice %8 {offsets = [0, 0], sizes = [1, 1536], strides = [1, 1]} : vector<2x1536xf32> to vector<1x1536xf32>
    %c0_8 = arith.constant 0 : index
    %c0_9 = arith.constant 0 : index
    %c0_10 = arith.constant 0 : index
    %10 = vector.load %arg5[%c0_8, %c0_9, %c0_10] : memref<1x1x1536xf32, #tpu.memory_space<vmem>>, vector<1x1x1536xf32>
    %11 = vector.shape_cast %10 : vector<1x1x1536xf32> to vector<1x1536xf32>
    %12 = vector.shape_cast %9 : vector<1x1536xf32> to vector<1x1x1536xf32>
    tpu.vector_store %arg5[%c0_8, %c0_9, %c0_10], %12 {strides = array<i32>} : memref<1x1x1536xf32, #tpu.memory_space<vmem>>, vector<1x1x1536xf32>,
    %13 = vector.extract_strided_slice %8 {offsets = [0, 0], sizes = [1, 1536], strides = [1, 1]} : vector<2x1536xf32> to vector<1x1536xf32>
    %14 = vector.extract_strided_slice %8 {offsets = [1, 0], sizes = [1, 1536], strides = [1, 1]} : vector<2x1536xf32> to vector<1x1536xf32>
    %15 = arith.addf %13, %14 : vector<1x1536xf32>
    %16 = math.tanh %15 : vector<1x1536xf32>
    %c0_11 = arith.constant 0 : index
    %c0_12 = arith.constant 0 : index
    %c0_13 = arith.constant 0 : index
    %17 = vector.load %arg4[%c0_11, %c0_12, %c0_13] : memref<1x1x1536xf32, #tpu.memory_space<vmem>>, vector<1x1x1536xf32>
    %18 = vector.shape_cast %17 : vector<1x1x1536xf32> to vector<1x1536xf32>
    %19 = vector.shape_cast %16 : vector<1x1536xf32> to vector<1x1x1536xf32>
    tpu.vector_store %arg4[%c0_11, %c0_12, %c0_13], %19 {strides = array<i32>} : memref<1x1x1536xf32, #tpu.memory_space<vmem>>, vector<1x1x1536xf32>,
    return
  }
  func.func @transform_0(%arg0: i32) -> (i32, i32, i32) {
    %c0_i32 = arith.constant 0 : i32
    %c0_i32_0 = arith.constant 0 : i32
    %c0_i32_1 = arith.constant 0 : i32
    return %arg0, %c0_i32, %c0_i32_0 : i32, i32, i32
  }
  func.func @transform_1(%arg0: i32) -> (i32, i32) {
    %c0_i32 = arith.constant 0 : i32
    %c0_i32_0 = arith.constant 0 : i32
    %c0_i32_1 = arith.constant 0 : i32
    return %c0_i32, %c0_i32_0 : i32, i32
  }
  func.func @transform_2(%arg0: i32) -> (i32, i32) {
    %c0_i32 = arith.constant 0 : i32
    %c0_i32_0 = arith.constant 0 : i32
    %c0_i32_1 = arith.constant 0 : i32
    return %c0_i32, %c0_i32_0 : i32, i32
  }
  func.func @transform_3(%arg0: i32) -> (i32, i32, i32) {
    %c0_i32 = arith.constant 0 : i32
    %c0_i32_0 = arith.constant 0 : i32
    %c0_i32_1 = arith.constant 0 : i32
    return %arg0, %c0_i32, %c0_i32_0 : i32, i32, i32
  }
  func.func @transform_4(%arg0: i32) -> (i32, i32, i32) {
    %c0_i32 = arith.constant 0 : i32
    %c0_i32_0 = arith.constant 0 : i32
    %c0_i32_1 = arith.constant 0 : i32
    return %arg0, %c0_i32, %c0_i32_0 : i32, i32, i32
  }
}

</mosaic_0001>

<llo_original>
// kernel: _generate_fake_impl.1
$region0: #{_generate_fake_impl.1}
  #allocation0 [shape = 'u32[]', space=smem, size = 0x4, offset = 0x4, fixed_abs, tag = 'smem constant byte address 0x4 - core index']
  #allocation1 [shape = 'u32[144,128]{1,0:T(1,128)}', space=vmem, size = 0x12000, scoped, tag = 'internal scratch']
  %s0 = inlined_call_operand.vmem [shape: bf16[2,58,1536], index: 0, kind: input, shape index: {}]
  %s1 = inlined_call_operand.vmem [shape: bf16[17,58], index: 1, kind: input, shape index: {}]
  %s2 = inlined_call_operand.vmem [shape: bf16[2,17], index: 2, kind: input, shape index: {}]
  %s3 = inlined_call_operand.vmem [shape: f32[2,1,1536], index: 3, kind: output, shape index: {0}]
  %s4 = inlined_call_operand.vmem [shape: f32[2,1,1536], index: 4, kind: output, shape index: {1}]
  %5 = xla_tuple %s3, %s4
  %s6 = sld [smem:[#allocation0]]
  $region53: #{_generate_fake_impl.1} parent=0
    _
  %s8 = ssub.s32 1, %s6
  %s9 = scalar_select 0, %s8, %s6
  loop: start=0, step=1, limit=4
  $region2: #{_generate_fake_impl.1} parent=0 // loop_pre_header
    _
  $region3: #{_generate_fake_impl.1} parent=0 // loop_header
    %s11 = sphi 0, %s15
    %p12 = scmp.ge.s32.totalorder %s11, 4
    %s21 = sphi 0, %s23
    %s24 = sphi 0, %s21
    %s25 = sphi 0, %s24
    %s41 = sphi 0, %s25
    %s45 = sphi 0, %s45
    %s47 = sphi 0, %s45
    %s48 = sphi 0, %s47
    %s62 = sphi 0, %s48
    %s66 = sphi 0, %s66
    %s68 = sphi 0, %s66
    %s69 = sphi 0, %s68
    %s83 = sphi 0, %s69
    %s89 = sphi 0, %s91
    %s92 = sphi 0, %s89
    %s93 = sphi 0, %s92
    %s109 = sphi 0, %s93
    %s115 = sphi 0, %s117
    %s118 = sphi 0, %s115
    %s119 = sphi 0, %s118
    %s135 = sphi 0, %s119
  $region4: #{_generate_fake_impl.1} parent=0 // loop_header_branch
    %14 = sbr.rel (%p12) target = $region8
  $region5: #{_generate_fake_impl.1} parent=0 // loop_body
    %s16 = ssub.s32 %s11, 1
    %s17 = ssub.s32 %s11, 2
    %s18 = sadd.s32 %s11, 1
    %s19 = ssub.s32 %s11, %s18
    %p20 = scmp.eq.s32.totalorder %s19, 0
    %s22 = sadd.s32 %s21, 1
    %s23 = scalar_select %p20, %s21, %s22
    %p26 = pneg %p20
    %p27 = scmp.eq.s32.totalorder %s11, 1
    %p28 = por %p26, %p27
    %p29 = scmp.ne.s32.totalorder %s21, %s24
    %p30 = scmp.eq.s32.totalorder %s11, 0
    %p31 = por %p29, %p30
    %p32 = scmp.ne.s32.totalorder %s21, %s24
    %p33 = scmp.eq.s32.totalorder %s16, 1
    %p34 = por %p32, %p33
    %p35 = scmp.ne.s32.totalorder %s24, %s25
    %p36 = scmp.eq.s32.totalorder %s16, 0
    %p37 = por %p35, %p36
    %p38 = scmp.ne.s32.totalorder %s24, %s25
    %p39 = scmp.eq.s32.totalorder %s17, 1
    %p40 = por %p38, %p39
    %p42 = scmp.ne.s32.totalorder %s25, %s41
    %p43 = scmp.eq.s32.totalorder %s17, 0
    %p44 = por %p42, %p43
    %s46 = sadd.s32 %s45, 1
    %p49 = scmp.eq.s32.totalorder %s11, 1
    %p50 = scmp.ne.s32.totalorder %s45, %s47
    %p51 = scmp.eq.s32.totalorder %s11, 0
    %p52 = por %p50, %p51
    %p53 = scmp.ne.s32.totalorder %s45, %s47
    %p54 = scmp.eq.s32.totalorder %s16, 1
    %p55 = por %p53, %p54
    %p56 = scmp.ne.s32.totalorder %s47, %s48
    %p57 = scmp.eq.s32.totalorder %s16, 0
    %p58 = por %p56, %p57
    %p59 = scmp.ne.s32.totalorder %s47, %s48
    %p60 = scmp.eq.s32.totalorder %s17, 1
    %p61 = por %p59, %p60
    %p63 = scmp.ne.s32.totalorder %s48, %s62
    %p64 = scmp.eq.s32.totalorder %s17, 0
    %p65 = por %p63, %p64
    %s67 = sadd.s32 %s66, 1
    %p70 = scmp.eq.s32.totalorder %s11, 1
    %p71 = scmp.ne.s32.totalorder %s66, %s68
    %p72 = scmp.eq.s32.totalorder %s11, 0
    %p73 = por %p71, %p72
    %p74 = scmp.ne.s32.totalorder %s66, %s68
    %p75 = scmp.eq.s32.totalorder %s16, 1
    %p76 = por %p74, %p75
    %p77 = scmp.ne.s32.totalorder %s68, %s69
    %p78 = scmp.eq.s32.totalorder %s16, 0
    %p79 = por %p77, %p78
    %p80 = scmp.ne.s32.totalorder %s68, %s69
    %p81 = scmp.eq.s32.totalorder %s17, 1
    %p82 = por %p80, %p81
    %p84 = scmp.ne.s32.totalorder %s69, %s83
    %p85 = scmp.eq.s32.totalorder %s17, 0
    %p86 = por %p84, %p85
    %s87 = ssub.s32 %s11, %s18
    %p88 = scmp.eq.s32.totalorder %s87, 0
    %s90 = sadd.s32 %s89, 1
    %s91 = scalar_select %p88, %s89, %s90
    %p94 = pneg %p88
    %p95 = scmp.eq.s32.totalorder %s11, 1
    %p96 = por %p94, %p95
    %p97 = scmp.ne.s32.totalorder %s89, %s92
    %p98 = scmp.eq.s32.totalorder %s11, 0
    %p99 = por %p97, %p98
    %p100 = scmp.ne.s32.totalorder %s89, %s92
    %p101 = scmp.eq.s32.totalorder %s16, 1
    %p102 = por %p100, %p101
    %p103 = scmp.ne.s32.totalorder %s92, %s93
    %p104 = scmp.eq.s32.totalorder %s16, 0
    %p105 = por %p103, %p104
    %p106 = scmp.ne.s32.totalorder %s92, %s93
    %p107 = scmp.eq.s32.totalorder %s17, 1
    %p108 = por %p106, %p107
    %p110 = scmp.ne.s32.totalorder %s93, %s109
    %p111 = scmp.eq.s32.totalorder %s17, 0
    %p112 = por %p110, %p111
    %s113 = ssub.s32 %s11, %s18
    %p114 = scmp.eq.s32.totalorder %s113, 0
    %s116 = sadd.s32 %s115, 1
    %s117 = scalar_select %p114, %s115, %s116
    %p120 = pneg %p114
    %p121 = scmp.eq.s32.totalorder %s11, 1
    %p122 = por %p120, %p121
    %p123 = scmp.ne.s32.totalorder %s115, %s118
    %p124 = scmp.eq.s32.totalorder %s11, 0
    %p125 = por %p123, %p124
    %p126 = scmp.ne.s32.totalorder %s115, %s118
    %p127 = scmp.eq.s32.totalorder %s16, 1
    %p128 = por %p126, %p127
    %p129 = scmp.ne.s32.totalorder %s118, %s119
    %p130 = scmp.eq.s32.totalorder %s16, 0
    %p131 = por %p129, %p130
    %p132 = scmp.ne.s32.totalorder %s118, %s119
    %p133 = scmp.eq.s32.totalorder %s17, 1
    %p134 = por %p132, %p133
    %p136 = scmp.ne.s32.totalorder %s119, %s135
    %p137 = scmp.eq.s32.totalorder %s17, 0
    %p138 = por %p136, %p137
    %p139 = scmp.le.s32.totalorder 1, %s11
    %p140 = scmp.lt.s32.totalorder %s11, 3
    %p141 = pnand %p139, %p140
    %p142 = pneg %p141
    // Predicated region
    $region9: #{_generate_fake_impl.1} parent=5 // pred_check
      _
    $region10: #{_generate_fake_impl.1} parent=5 // pred_check_branch
      %144 = sbr.rel (%p141) target = $region12
    $region11: #{_generate_fake_impl.1} parent=5 // pred_region
      %s145 = ssub.s32 %s11, 1
      // Predicated region
      $region13: #{_generate_fake_impl.1} parent=11 // pred_check
        %p146 = pneg %p58
      $region14: #{_generate_fake_impl.1} parent=11 // pred_check_branch
        %148 = sbr.rel (%p146) target = $region16
      $region15: #{_generate_fake_impl.1} parent=11 // pred_region
        _
      $region16: #{_generate_fake_impl.1} parent=11 // pred_fallthru
        _
      // Predicated region
      $region17: #{_generate_fake_impl.1} parent=11 // pred_check
        %p149 = pneg %p79
      $region18: #{_generate_fake_impl.1} parent=11 // pred_check_branch
        %151 = sbr.rel (%p149) target = $region20
      $region19: #{_generate_fake_impl.1} parent=11 // pred_region
        _
      $region20: #{_generate_fake_impl.1} parent=11 // pred_fallthru
        _
    $region12: #{_generate_fake_impl.1} parent=5 // pred_fallthru
      _
    %p152 = scmp.lt.s32.totalorder %s11, 2
    // Predicated region
    $region21: #{_generate_fake_impl.1} parent=5 // pred_check
      %p153 = pneg %p152
    $region22: #{_generate_fake_impl.1} parent=5 // pred_check_branch
      %155 = sbr.rel (%p153) target = $region24
    $region23: #{_generate_fake_impl.1} parent=5 // pred_region
      // Predicated region
      $region25: #{_generate_fake_impl.1} parent=23 // pred_check
        %p156 = pneg %p31
      $region26: #{_generate_fake_impl.1} parent=23 // pred_check_branch
        %158 = sbr.rel (%p156) target = $region28
      $region27: #{_generate_fake_impl.1} parent=23 // pred_region
        %p159 = scmp.lt.s32.totalorder %s11, 1
        %s160 = scalar_select %p159, %s11, 1
        %s161 = smul.addr %s160, 96
        %s162 = smul.addr %s161, 4
        %s163 = scalar_lea.vmem %s0, %s162
      $region28: #{_generate_fake_impl.1} parent=23 // pred_fallthru
        _
    $region24: #{_generate_fake_impl.1} parent=5 // pred_fallthru
      _
    %p164 = scmp.le.s32.totalorder 1, %s11
    %p165 = scmp.lt.s32.totalorder %s11, 3
    %p166 = pnand %p164, %p165
    %p167 = pneg %p166
    // Predicated region
    $region29: #{_generate_fake_impl.1} parent=5 // pred_check
      _
    $region30: #{_generate_fake_impl.1} parent=5 // pred_check_branch
      %169 = sbr.rel (%p166) target = $region32
    $region31: #{_generate_fake_impl.1} parent=5 // pred_region
      %s170 = ssub.s32 %s11, 1
      %p171 = scmp.lt.s32.totalorder %s16, 1
      %s172 = scalar_select %p171, %s16, 1
      %s173 = smul.addr %s172, 96
      %s174 = smul.addr %s173, 4
      %s175 = scalar_lea.vmem %s0, %s174
      %p176 = pneg %p37
      %p177 = pneg %p34
      %p178 = pneg %p58
      %p179 = pneg %p55
      %p180 = pneg %p79
      %p181 = pneg %p76
      %p182 = pneg %p105
      %p183 = pneg %p102
      %p184 = scmp.lt.s32.totalorder %s16, 1
      %s185 = scalar_select %p184, %s16, 1
      %s186 = smul.addr %s185, 12
      %s187 = scalar_lea.vmem %s3, %s186
      %p188 = pneg %p131
      %p189 = pneg %p128
      %p190 = scmp.lt.s32.totalorder %s16, 1
      %s191 = scalar_select %p190, %s16, 1
      %s192 = smul.addr %s191, 12
      %s193 = scalar_lea.vmem %s4, %s192
      %p194 = scmp.lt.s32.totalorder %s16, 1
      %s195 = scalar_select %p194, %s16, 1
      %s196 = smul.addr %s195, 96
      %s197 = smul.addr %s196, 4
      %s198 = scalar_lea.vmem %s0, %s197
      %p199 = scmp.lt.s32.totalorder %s16, 1
      %s200 = scalar_select %p199, %s16, 1
      %s201 = smul.addr %s200, 12
      %s202 = scalar_lea.vmem %s3, %s201
      %p203 = scmp.lt.s32.totalorder %s16, 1
      %s204 = scalar_select %p203, %s16, 1
      %s205 = smul.addr %s204, 12
      %s206 = scalar_lea.vmem %s4, %s205
      %v208 = vld [vmem:[%s1] sm:$0xf]
      %v209 = vld [vmem:[%s1 + $0x4] sm:$0xf]
      %v210 = vld [vmem:[%s1 + $0x8] sm:$0x1]
      %v211 = vld [vmem:[%s198] sm:$0xff]
      %v212 = vld [vmem:[%s198 + $0x8] sm:$0xff]
      %v213 = vld [vmem:[%s198 + $0x10] sm:$0xff]
      %v214 = vld [vmem:[%s198 + $0x18] sm:$0xff]
      %v215 = vld [vmem:[%s198 + $0x20] sm:$0xff]
      %v216 = vld [vmem:[%s198 + $0x28] sm:$0xff]
      %v217 = vld [vmem:[%s198 + $0x30] sm:$0xff]
      %v218 = vld [vmem:[%s198 + $0x38] sm:$0xff]
      %v219 = vld [vmem:[%s198 + $0x40] sm:$0xff]
      %v220 = vld [vmem:[%s198 + $0x48] sm:$0xff]
      %v221 = vld [vmem:[%s198 + $0x50] sm:$0xff]
      %v222 = vld [vmem:[%s198 + $0x58] sm:$0xff]
      %v223 = vld [vmem:[%s198 + $0x60] sm:$0xff]
      %v224 = vld [vmem:[%s198 + $0x68] sm:$0xff]
      %v225 = vld [vmem:[%s198 + $0x70] sm:$0xff]
      %v226 = vld [vmem:[%s198 + $0x78] sm:$0xff]
      %v227 = vld [vmem:[%s198 + $0x80] sm:$0xff]
      %v228 = vld [vmem:[%s198 + $0x88] sm:$0xff]
      %v229 = vld [vmem:[%s198 + $0x90] sm:$0xff]
      %v230 = vld [vmem:[%s198 + $0x98] sm:$0xff]
      %v231 = vld [vmem:[%s198 + $0xa0] sm:$0xff]
      %v232 = vld [vmem:[%s198 + $0xa8] sm:$0xff]
      %v233 = vld [vmem:[%s198 + $0xb0] sm:$0xff]
      %v234 = vld [vmem:[%s198 + $0xb8] sm:$0xff]
      %v235 = vld [vmem:[%s198 + $0xc0] sm:$0xff]
      %v236 = vld [vmem:[%s198 + $0xc8] sm:$0xff]
      %v237 = vld [vmem:[%s198 + $0xd0] sm:$0xff]
      %v238 = vld [vmem:[%s198 + $0xd8] sm:$0xff]
      %v239 = vld [vmem:[%s198 + $0xe0] sm:$0xff]
      %v240 = vld [vmem:[%s198 + $0xe8] sm:$0xff]
      %v241 = vld [vmem:[%s198 + $0xf0] sm:$0xff]
      %v242 = vld [vmem:[%s198 + $0xf8] sm:$0xff]
      %v243 = vld [vmem:[%s198 + $0x100] sm:$0xff]
      %v244 = vld [vmem:[%s198 + $0x108] sm:$0xff]
      %v245 = vld [vmem:[%s198 + $0x110] sm:$0xff]
      %v246 = vld [vmem:[%s198 + $0x118] sm:$0xff]
      %v247 = vld [vmem:[%s198 + $0x120] sm:$0xff]
      %v248 = vld [vmem:[%s198 + $0x128] sm:$0xff]
      %v249 = vld [vmem:[%s198 + $0x130] sm:$0xff]
      %v250 = vld [vmem:[%s198 + $0x138] sm:$0xff]
      %v251 = vld [vmem:[%s198 + $0x140] sm:$0xff]
      %v252 = vld [vmem:[%s198 + $0x148] sm:$0xff]
      %v253 = vld [vmem:[%s198 + $0x150] sm:$0x11]
      %v254 = vld [vmem:[%s198 + $0x158] sm:$0x11]
      %v255 = vld [vmem:[%s198 + $0x160] sm:$0x11]
      %v256 = vld [vmem:[%s198 + $0x168] sm:$0x11]
      %v257 = vld [vmem:[%s198 + $0x170] sm:$0x11]
      %v258 = vld [vmem:[%s198 + $0x178] sm:$0x11]
      %v262 = vunpack.c.l.b16 %v208
      %v263 = vunpack.c.l.b16 %v209
      %v264 = vunpack.c.l.b16 %v210
      %v265 = vpack.c.b16 %v263, %v262
      %v266 = vpack.c.b16 %v264, %v264
      %v315 = vunpack.c.l.b16 %v211
      %v316 = vunpack.c.h.b16 %v211
      %v317 = vunpack.c.l.b16 %v212
      %v318 = vunpack.c.h.b16 %v212
      %v319 = vunpack.c.l.b16 %v213
      %v320 = vunpack.c.h.b16 %v213
      %v321 = vunpack.c.l.b16 %v214
      %v322 = vunpack.c.h.b16 %v214
      %v323 = vunpack.c.l.b16 %v215
      %v324 = vunpack.c.h.b16 %v215
      %v325 = vunpack.c.l.b16 %v216
      %v326 = vunpack.c.h.b16 %v216
      %v327 = vunpack.c.l.b16 %v217
      %v328 = vunpack.c.h.b16 %v217
      %v329 = vunpack.c.l.b16 %v218
      %v330 = vunpack.c.h.b16 %v218
      %v331 = vunpack.c.l.b16 %v219
      %v332 = vunpack.c.h.b16 %v219
      %v333 = vunpack.c.l.b16 %v220
      %v334 = vunpack.c.h.b16 %v220
      %v335 = vunpack.c.l.b16 %v221
      %v336 = vunpack.c.h.b16 %v221
      %v337 = vunpack.c.l.b16 %v222
      %v338 = vunpack.c.h.b16 %v222
      %v339 = vunpack.c.l.b16 %v223
      %v340 = vunpack.c.h.b16 %v223
      %v341 = vunpack.c.l.b16 %v224
      %v342 = vunpack.c.h.b16 %v224
      %v343 = vunpack.c.l.b16 %v225
      %v344 = vunpack.c.h.b16 %v225
      %v345 = vunpack.c.l.b16 %v226
      %v346 = vunpack.c.h.b16 %v226
      %v347 = vunpack.c.l.b16 %v227
      %v348 = vunpack.c.h.b16 %v227
      %v349 = vunpack.c.l.b16 %v228
      %v350 = vunpack.c.h.b16 %v228
      %v351 = vunpack.c.l.b16 %v229
      %v352 = vunpack.c.h.b16 %v229
      %v353 = vunpack.c.l.b16 %v230
      %v354 = vunpack.c.h.b16 %v230
      %v355 = vunpack.c.l.b16 %v231
      %v356 = vunpack.c.h.b16 %v231
      %v357 = vunpack.c.l.b16 %v232
      %v358 = vunpack.c.h.b16 %v232
      %v359 = vunpack.c.l.b16 %v233
      %v360 = vunpack.c.h.b16 %v233
      %v361 = vunpack.c.l.b16 %v234
      %v362 = vunpack.c.h.b16 %v234
      %v363 = vunpack.c.l.b16 %v235
      %v364 = vunpack.c.h.b16 %v235
      %v365 = vunpack.c.l.b16 %v236
      %v366 = vunpack.c.h.b16 %v236
      %v367 = vunpack.c.l.b16 %v237
      %v368 = vunpack.c.h.b16 %v237
      %v369 = vunpack.c.l.b16 %v238
      %v370 = vunpack.c.h.b16 %v238
      %v371 = vunpack.c.l.b16 %v239
      %v372 = vunpack.c.h.b16 %v239
      %v373 = vunpack.c.l.b16 %v240
      %v374 = vunpack.c.h.b16 %v240
      %v375 = vunpack.c.l.b16 %v241
      %v376 = vunpack.c.h.b16 %v241
      %v377 = vunpack.c.l.b16 %v242
      %v378 = vunpack.c.h.b16 %v242
      %v379 = vunpack.c.l.b16 %v243
      %v380 = vunpack.c.h.b16 %v243
      %v381 = vunpack.c.l.b16 %v244
      %v382 = vunpack.c.h.b16 %v244
      %v383 = vunpack.c.l.b16 %v245
      %v384 = vunpack.c.h.b16 %v245
      %v385 = vunpack.c.l.b16 %v246
      %v386 = vunpack.c.h.b16 %v246
      %v387 = vunpack.c.l.b16 %v247
      %v388 = vunpack.c.h.b16 %v247
      %v389 = vunpack.c.l.b16 %v248
      %v390 = vunpack.c.h.b16 %v248
      %v391 = vunpack.c.l.b16 %v249
      %v392 = vunpack.c.h.b16 %v249
      %v393 = vunpack.c.l.b16 %v250
      %v394 = vunpack.c.h.b16 %v250
      %v395 = vunpack.c.l.b16 %v251
      %v396 = vunpack.c.h.b16 %v251
      %v397 = vunpack.c.l.b16 %v252
      %v398 = vunpack.c.h.b16 %v252
      %v399 = vunpack.c.l.b16 %v253
      %v400 = vunpack.c.h.b16 %v253
      %v401 = vunpack.c.l.b16 %v254
      %v402 = vunpack.c.h.b16 %v254
      %v403 = vunpack.c.l.b16 %v255
      %v404 = vunpack.c.h.b16 %v255
      %v405 = vunpack.c.l.b16 %v256
      %v406 = vunpack.c.h.b16 %v256
      %v407 = vunpack.c.l.b16 %v257
      %v408 = vunpack.c.h.b16 %v257
      %v409 = vunpack.c.l.b16 %v258
      %v410 = vunpack.c.h.b16 %v258
      %v411 = vpack.c.b16 %v327, %v315
      %v412 = vpack.c.b16 %v328, %v316
      %v413 = vpack.c.b16 %v329, %v317
      %v414 = vpack.c.b16 %v330, %v318
      %v415 = vpack.c.b16 %v331, %v319
      %v416 = vpack.c.b16 %v332, %v320
      %v417 = vpack.c.b16 %v333, %v321
      %v418 = vpack.c.b16 %v334, %v322
      %v419 = vpack.c.b16 %v335, %v323
      %v420 = vpack.c.b16 %v336, %v324
      %v421 = vpack.c.b16 %v337, %v325
      %v422 = vpack.c.b16 %v338, %v326
      %v423 = vpack.c.b16 %v351, %v339
      %v424 = vpack.c.b16 %v352, %v340
      %v425 = vpack.c.b16 %v353, %v341
      %v426 = vpack.c.b16 %v354, %v342
      %v427 = vpack.c.b16 %v355, %v343
      %v428 = vpack.c.b16 %v356, %v344
      %v429 = vpack.c.b16 %v357, %v345
      %v430 = vpack.c.b16 %v358, %v346
      %v431 = vpack.c.b16 %v359, %v347
      %v432 = vpack.c.b16 %v360, %v348
      %v433 = vpack.c.b16 %v361, %v349
      %v434 = vpack.c.b16 %v362, %v350
      %v435 = vpack.c.b16 %v375, %v363
      %v436 = vpack.c.b16 %v376, %v364
      %v437 = vpack.c.b16 %v377, %v365
      %v438 = vpack.c.b16 %v378, %v366
      %v439 = vpack.c.b16 %v379, %v367
      %v440 = vpack.c.b16 %v380, %v368
      %v441 = vpack.c.b16 %v381, %v369
      %v442 = vpack.c.b16 %v382, %v370
      %v443 = vpack.c.b16 %v383, %v371
      %v444 = vpack.c.b16 %v384, %v372
      %v445 = vpack.c.b16 %v385, %v373
      %v446 = vpack.c.b16 %v386, %v374
      %v447 = vpack.c.b16 %v399, %v387
      %v448 = vpack.c.b16 %v400, %v388
      %v449 = vpack.c.b16 %v401, %v389
      %v450 = vpack.c.b16 %v402, %v390
      %v451 = vpack.c.b16 %v403, %v391
      %v452 = vpack.c.b16 %v404, %v392
      %v453 = vpack.c.b16 %v405, %v393
      %v454 = vpack.c.b16 %v406, %v394
      %v455 = vpack.c.b16 %v407, %v395
      %v456 = vpack.c.b16 %v408, %v396
      %v457 = vpack.c.b16 %v409, %v397
      %v458 = vpack.c.b16 %v410, %v398
      %vm495 = vcmask 474112
      %v497 = vsel %vm495, %v265, 0
      %v500 = vsel %vm495, %v266, 0
      %vm502 = vcmask 1044480
      %v504 = vsel %vm502, %v447, 0
      %v507 = vsel %vm502, %v448, 0
      %v510 = vsel %vm502, %v449, 0
      %v513 = vsel %vm502, %v450, 0
      %v516 = vsel %vm502, %v451, 0
      %v519 = vsel %vm502, %v452, 0
      %v522 = vsel %vm502, %v453, 0
      %v525 = vsel %vm502, %v454, 0
      %v528 = vsel %vm502, %v455, 0
      %v531 = vsel %vm502, %v456, 0
      %v534 = vsel %vm502, %v457, 0
      %v537 = vsel %vm502, %v458, 0
      %539 = vmatprep.subr.bf16.mxu0 %v412
      %540 = vmatpush1.bf16.msra.mxu0 %v411
      %541 = vmatprep.subr.bf16.mxu0 %v424
      %542 = vmatpush1.bf16.msra.mxu0 %v423
      %543 = vmatprep.subr.bf16.mxu0 %v436
      %544 = vmatpush1.bf16.msra.mxu0 %v435
      %545 = vmatprep.subr.bf16.mxu0 %v507
      %546 = vmatpush1.bf16.msra.mxu0 %v504
      %547 = vmatprep.subr.bf16.mxu0 0
      %548 = vmatpush1.bf16.msra.mxu0 0
      %549 = vmatprep.subr.bf16.mxu0 0
      %550 = vmatpush1.bf16.msra.mxu0 0
      %551 = vmatprep.subr.bf16.mxu0 0
      %552 = vmatpush1.bf16.msra.mxu0 0
      %553 = vmatprep.subr.bf16.mxu0 0
      %554 = vmatpush1.bf16.msra.mxu0 0
      %555 = vmatprep.subr.bf16.mxu0 0
      %556 = vmatpush1.bf16.msra.mxu0 0
      %557 = vmatprep.subr.bf16.mxu0 0
      %558 = vmatpush1.bf16.msra.mxu0 0
      %559 = vmatprep.subr.bf16.mxu0 0
      %560 = vmatpush1.bf16.msra.mxu0 0
      %561 = vmatprep.subr.bf16.mxu0 0
      %562 = vmatpush1.bf16.msra.mxu0 0
      %563 = vmatprep.subr.bf16.mxu0 0
      %564 = vmatpush1.bf16.msra.mxu0 0
      %565 = vmatprep.subr.bf16.mxu0 0
      %566 = vmatpush1.bf16.msra.mxu0 0
      %567 = vmatprep.subr.bf16.mxu0 0
      %568 = vmatpush1.bf16.msra.mxu0 0
      %569 = vmatprep.subr.bf16.mxu0 0
      %570 = vmatpush1.bf16.msra.mxu0 0
      %571 = vmatprep.mubr.bf16.mxu0 0
      %572 = vmatmul.mubr.bf16.gmra.mrb[0].mxu0 %v497
      %v573 = vpop.f32.mrb[0].mxu0
      %v574 = vadd.f32 0.0, %v573
      %v575 = vpop.f32.mrb[0].mxu0
      %v576 = vadd.f32 0.0, %v575
      %v577 = vpop.f32.mrb[0].mxu0
      %v578 = vadd.f32 0.0, %v577
      %v579 = vpop.f32.mrb[0].mxu0
      %v580 = vadd.f32 0.0, %v579
      %581 = vmatprep.mubr.bf16.mxu0 0
      %582 = vmatmul.mubr.bf16.gmra.mrb[0].mxu0 %v500
      %v583 = vpop.f32.mrb[0].mxu0
      %v584 = vadd.f32 0.0, %v583
      %v585 = vpop.f32.mrb[0].mxu0
      %v586 = vadd.f32 0.0, %v585
      %v587 = vpop.f32.mrb[0].mxu0
      %v588 = vpop.f32.mrb[0].mxu0
      %589 = vdwg.mxu0
      %590 = vmatprep.subr.bf16.mxu0 %v414
      %591 = vmatpush1.bf16.msra.mxu0 %v413
      %592 = vmatprep.subr.bf16.mxu0 %v426
      %593 = vmatpush1.bf16.msra.mxu0 %v425
      %594 = vmatprep.subr.bf16.mxu0 %v438
      %595 = vmatpush1.bf16.msra.mxu0 %v437
      %596 = vmatprep.subr.bf16.mxu0 %v513
      %597 = vmatpush1.bf16.msra.mxu0 %v510
      %598 = vmatprep.subr.bf16.mxu0 0
      %599 = vmatpush1.bf16.msra.mxu0 0
      %600 = vmatprep.subr.bf16.mxu0 0
      %601 = vmatpush1.bf16.msra.mxu0 0
      %602 = vmatprep.subr.bf16.mxu0 0
      %603 = vmatpush1.bf16.msra.mxu0 0
      %604 = vmatprep.subr.bf16.mxu0 0
      %605 = vmatpush1.bf16.msra.mxu0 0
      %606 = vmatprep.subr.bf16.mxu0 0
      %607 = vmatpush1.bf16.msra.mxu0 0
      %608 = vmatprep.subr.bf16.mxu0 0
      %609 = vmatpush1.bf16.msra.mxu0 0
      %610 = vmatprep.subr.bf16.mxu0 0
      %611 = vmatpush1.bf16.msra.mxu0 0
      %612 = vmatprep.subr.bf16.mxu0 0
      %613 = vmatpush1.bf16.msra.mxu0 0
      %614 = vmatprep.subr.bf16.mxu0 0
      %615 = vmatpush1.bf16.msra.mxu0 0
      %616 = vmatprep.subr.bf16.mxu0 0
      %617 = vmatpush1.bf16.msra.mxu0 0
      %618 = vmatprep.subr.bf16.mxu0 0
      %619 = vmatpush1.bf16.msra.mxu0 0
      %620 = vmatprep.subr.bf16.mxu0 0
      %621 = vmatpush1.bf16.msra.mxu0 0
      %622 = vmatprep.mubr.bf16.mxu0 0
      %623 = vmatmul.mubr.bf16.gmra.mrb[0].mxu0 %v497
      %v624 = vpop.f32.mrb[0].mxu0
      %v625 = vadd.f32 0.0, %v624
      %v626 = vpop.f32.mrb[0].mxu0
      %v627 = vadd.f32 0.0, %v626
      %v628 = vpop.f32.mrb[0].mxu0
      %v629 = vadd.f32 0.0, %v628
      %v630 = vpop.f32.mrb[0].mxu0
      %v631 = vadd.f32 0.0, %v630
      %632 = vmatprep.mubr.bf16.mxu0 0
      %633 = vmatmul.mubr.bf16.gmra.mrb[0].mxu0 %v500
      %v634 = vpop.f32.mrb[0].mxu0
      %v635 = vadd.f32 0.0, %v634
      %v636 = vpop.f32.mrb[0].mxu0
      %v637 = vadd.f32 0.0, %v636
      %v638 = vpop.f32.mrb[0].mxu0
      %v639 = vpop.f32.mrb[0].mxu0
      %640 = vdwg.mxu0
      %641 = vmatprep.subr.bf16.mxu0 %v416
      %642 = vmatpush1.bf16.msra.mxu0 %v415
      %643 = vmatprep.subr.bf16.mxu0 %v428
      %644 = vmatpush1.bf16.msra.mxu0 %v427
      %645 = vmatprep.subr.bf16.mxu0 %v440
      %646 = vmatpush1.bf16.msra.mxu0 %v439
      %647 = vmatprep.subr.bf16.mxu0 %v519
      %648 = vmatpush1.bf16.msra.mxu0 %v516
      %649 = vmatprep.subr.bf16.mxu0 0
      %650 = vmatpush1.bf16.msra.mxu0 0
      %651 = vmatprep.subr.bf16.mxu0 0
      %652 = vmatpush1.bf16.msra.mxu0 0
      %653 = vmatprep.subr.bf16.mxu0 0
      %654 = vmatpush1.bf16.msra.mxu0 0
      %655 = vmatprep.subr.bf16.mxu0 0
      %656 = vmatpush1.bf16.msra.mxu0 0
      %657 = vmatprep.subr.bf16.mxu0 0
      %658 = vmatpush1.bf16.msra.mxu0 0
      %659 = vmatprep.subr.bf16.mxu0 0
      %660 = vmatpush1.bf16.msra.mxu0 0
      %661 = vmatprep.subr.bf16.mxu0 0
      %662 = vmatpush1.bf16.msra.mxu0 0
      %663 = vmatprep.subr.bf16.mxu0 0
      %664 = vmatpush1.bf16.msra.mxu0 0
      %665 = vmatprep.subr.bf16.mxu0 0
      %666 = vmatpush1.bf16.msra.mxu0 0
      %667 = vmatprep.subr.bf16.mxu0 0
      %668 = vmatpush1.bf16.msra.mxu0 0
      %669 = vmatprep.subr.bf16.mxu0 0
      %670 = vmatpush1.bf16.msra.mxu0 0
      %671 = vmatprep.subr.bf16.mxu0 0
      %672 = vmatpush1.bf16.msra.mxu0 0
      %673 = vmatprep.mubr.bf16.mxu0 0
      %674 = vmatmul.mubr.bf16.gmra.mrb[0].mxu0 %v497
      %v675 = vpop.f32.mrb[0].mxu0
      %v676 = vadd.f32 0.0, %v675
      %v677 = vpop.f32.mrb[0].mxu0
      %v678 = vadd.f32 0.0, %v677
      %v679 = vpop.f32.mrb[0].mxu0
      %v680 = vadd.f32 0.0, %v679
      %v681 = vpop.f32.mrb[0].mxu0
      %v682 = vadd.f32 0.0, %v681
      %683 = vmatprep.mubr.bf16.mxu0 0
      %684 = vmatmul.mubr.bf16.gmra.mrb[0].mxu0 %v500
      %v685 = vpop.f32.mrb[0].mxu0
      %v686 = vadd.f32 0.0, %v685
      %v687 = vpop.f32.mrb[0].mxu0
      %v688 = vadd.f32 0.0, %v687
      %v689 = vpop.f32.mrb[0].mxu0
      %v690 = vpop.f32.mrb[0].mxu0
      %691 = vdwg.mxu0
      %692 = vmatprep.subr.bf16.mxu0 %v418
      %693 = vmatpush1.bf16.msra.mxu0 %v417
      %694 = vmatprep.subr.bf16.mxu0 %v430
      %695 = vmatpush1.bf16.msra.mxu0 %v429
      %696 = vmatprep.subr.bf16.mxu0 %v442
      %697 = vmatpush1.bf16.msra.mxu0 %v441
      %698 = vmatprep.subr.bf16.mxu0 %v525
      %699 = vmatpush1.bf16.msra.mxu0 %v522
      %700 = vmatprep.subr.bf16.mxu0 0
      %701 = vmatpush1.bf16.msra.mxu0 0
      %702 = vmatprep.subr.bf16.mxu0 0
      %703 = vmatpush1.bf16.msra.mxu0 0
      %704 = vmatprep.subr.bf16.mxu0 0
      %705 = vmatpush1.bf16.msra.mxu0 0
      %706 = vmatprep.subr.bf16.mxu0 0
      %707 = vmatpush1.bf16.msra.mxu0 0
      %708 = vmatprep.subr.bf16.mxu0 0
      %709 = vmatpush1.bf16.msra.mxu0 0
      %710 = vmatprep.subr.bf16.mxu0 0
      %711 = vmatpush1.bf16.msra.mxu0 0
      %712 = vmatprep.subr.bf16.mxu0 0
      %713 = vmatpush1.bf16.msra.mxu0 0
      %714 = vmatprep.subr.bf16.mxu0 0
      %715 = vmatpush1.bf16.msra.mxu0 0
      %716 = vmatprep.subr.bf16.mxu0 0
      %717 = vmatpush1.bf16.msra.mxu0 0
      %718 = vmatprep.subr.bf16.mxu0 0
      %719 = vmatpush1.bf16.msra.mxu0 0
      %720 = vmatprep.subr.bf16.mxu0 0
      %721 = vmatpush1.bf16.msra.mxu0 0
      %722 = vmatprep.subr.bf16.mxu0 0
      %723 = vmatpush1.bf16.msra.mxu0 0
      %724 = vmatprep.mubr.bf16.mxu0 0
      %725 = vmatmul.mubr.bf16.gmra.mrb[0].mxu0 %v497
      %v726 = vpop.f32.mrb[0].mxu0
      %v727 = vadd.f32 0.0, %v726
      %v728 = vpop.f32.mrb[0].mxu0
      %v729 = vadd.f32 0.0, %v728
      %v730 = vpop.f32.mrb[0].mxu0
      %v731 = vadd.f32 0.0, %v730
      %v732 = vpop.f32.mrb[0].mxu0
      %v733 = vadd.f32 0.0, %v732
      %734 = vmatprep.mubr.bf16.mxu0 0
      %735 = vmatmul.mubr.bf16.gmra.mrb[0].mxu0 %v500
      %v736 = vpop.f32.mrb[0].mxu0
      %v737 = vadd.f32 0.0, %v736
      %v738 = vpop.f32.mrb[0].mxu0
      %v739 = vadd.f32 0.0, %v738
      %v740 = vpop.f32.mrb[0].mxu0
      %v741 = vpop.f32.mrb[0].mxu0
      %742 = vdwg.mxu0
      %743 = vmatprep.subr.bf16.mxu0 %v420
      %744 = vmatpush1.bf16.msra.mxu0 %v419
      %745 = vmatprep.subr.bf16.mxu0 %v432
      %746 = vmatpush1.bf16.msra.mxu0 %v431
      %747 = vmatprep.subr.bf16.mxu0 %v444
      %748 = vmatpush1.bf16.msra.mxu0 %v443
      %749 = vmatprep.subr.bf16.mxu0 %v531
      %750 = vmatpush1.bf16.msra.mxu0 %v528
      %751 = vmatprep.subr.bf16.mxu0 0
      %752 = vmatpush1.bf16.msra.mxu0 0
      %753 = vmatprep.subr.bf16.mxu0 0
      %754 = vmatpush1.bf16.msra.mxu0 0
      %755 = vmatprep.subr.bf16.mxu0 0
      %756 = vmatpush1.bf16.msra.mxu0 0
      %757 = vmatprep.subr.bf16.mxu0 0
      %758 = vmatpush1.bf16.msra.mxu0 0
      %759 = vmatprep.subr.bf16.mxu0 0
      %760 = vmatpush1.bf16.msra.mxu0 0
      %761 = vmatprep.subr.bf16.mxu0 0
      %762 = vmatpush1.bf16.msra.mxu0 0
      %763 = vmatprep.subr.bf16.mxu0 0
      %764 = vmatpush1.bf16.msra.mxu0 0
      %765 = vmatprep.subr.bf16.mxu0 0
      %766 = vmatpush1.bf16.msra.mxu0 0
      %767 = vmatprep.subr.bf16.mxu0 0
      %768 = vmatpush1.bf16.msra.mxu0 0
      %769 = vmatprep.subr.bf16.mxu0 0
      %770 = vmatpush1.bf16.msra.mxu0 0
      %771 = vmatprep.subr.bf16.mxu0 0
      %772 = vmatpush1.bf16.msra.mxu0 0
      %773 = vmatprep.subr.bf16.mxu0 0
      %774 = vmatpush1.bf16.msra.mxu0 0
      %775 = vmatprep.mubr.bf16.mxu0 0
      %776 = vmatmul.mubr.bf16.gmra.mrb[0].mxu0 %v497
      %v777 = vpop.f32.mrb[0].mxu0
      %v778 = vadd.f32 0.0, %v777
      %v779 = vpop.f32.mrb[0].mxu0
      %v780 = vadd.f32 0.0, %v779
      %v781 = vpop.f32.mrb[0].mxu0
      %v782 = vadd.f32 0.0, %v781
      %v783 = vpop.f32.mrb[0].mxu0
      %v784 = vadd.f32 0.0, %v783
      %785 = vmatprep.mubr.bf16.mxu0 0
      %786 = vmatmul.mubr.bf16.gmra.mrb[0].mxu0 %v500
      %v787 = vpop.f32.mrb[0].mxu0
      %v788 = vadd.f32 0.0, %v787
      %v789 = vpop.f32.mrb[0].mxu0
      %v790 = vadd.f32 0.0, %v789
      %v791 = vpop.f32.mrb[0].mxu0
      %v792 = vpop.f32.mrb[0].mxu0
      %793 = vdwg.mxu0
      %794 = vmatprep.subr.bf16.mxu0 %v422
      %795 = vmatpush1.bf16.msra.mxu0 %v421
      %796 = vmatprep.subr.bf16.mxu0 %v434
      %797 = vmatpush1.bf16.msra.mxu0 %v433
      %798 = vmatprep.subr.bf16.mxu0 %v446
      %799 = vmatpush1.bf16.msra.mxu0 %v445
      %800 = vmatprep.subr.bf16.mxu0 %v537
      %801 = vmatpush1.bf16.msra.mxu0 %v534
      %802 = vmatprep.subr.bf16.mxu0 0
      %803 = vmatpush1.bf16.msra.mxu0 0
      %804 = vmatprep.subr.bf16.mxu0 0
      %805 = vmatpush1.bf16.msra.mxu0 0
      %806 = vmatprep.subr.bf16.mxu0 0
      %807 = vmatpush1.bf16.msra.mxu0 0
      %808 = vmatprep.subr.bf16.mxu0 0
      %809 = vmatpush1.bf16.msra.mxu0 0
      %810 = vmatprep.subr.bf16.mxu0 0
      %811 = vmatpush1.bf16.msra.mxu0 0
      %812 = vmatprep.subr.bf16.mxu0 0
      %813 = vmatpush1.bf16.msra.mxu0 0
      %814 = vmatprep.subr.bf16.mxu0 0
      %815 = vmatpush1.bf16.msra.mxu0 0
      %816 = vmatprep.subr.bf16.mxu0 0
      %817 = vmatpush1.bf16.msra.mxu0 0
      %818 = vmatprep.subr.bf16.mxu0 0
      %819 = vmatpush1.bf16.msra.mxu0 0
      %820 = vmatprep.subr.bf16.mxu0 0
      %821 = vmatpush1.bf16.msra.mxu0 0
      %822 = vmatprep.subr.bf16.mxu0 0
      %823 = vmatpush1.bf16.msra.mxu0 0
      %824 = vmatprep.subr.bf16.mxu0 0
      %825 = vmatpush1.bf16.msra.mxu0 0
      %826 = vmatprep.mubr.bf16.mxu0 0
      %827 = vmatmul.mubr.bf16.gmra.mrb[0].mxu0 %v497
      %v828 = vpop.f32.mrb[0].mxu0
      %v829 = vadd.f32 0.0, %v828
      %v830 = vpop.f32.mrb[0].mxu0
      %v831 = vadd.f32 0.0, %v830
      %v832 = vpop.f32.mrb[0].mxu0
      %v833 = vadd.f32 0.0, %v832
      %v834 = vpop.f32.mrb[0].mxu0
      %v835 = vadd.f32 0.0, %v834
      %836 = vmatprep.mubr.bf16.mxu0 0
      %837 = vmatmul.mubr.bf16.gmra.mrb[0].mxu0 %v500
      %v838 = vpop.f32.mrb[0].mxu0
      %v839 = vadd.f32 0.0, %v838
      %v840 = vpop.f32.mrb[0].mxu0
      %v841 = vadd.f32 0.0, %v840
      %v842 = vpop.f32.mrb[0].mxu0
      %v843 = vpop.f32.mrb[0].mxu0
      %844 = vdwg.mxu0
      %v845 = vmax.f32 %v574, 0.0
      %v846 = vmax.f32 %v576, 0.0
      %v847 = vmax.f32 %v625, 0.0
      %v848 = vmax.f32 %v627, 0.0
      %v849 = vmax.f32 %v676, 0.0
      %v850 = vmax.f32 %v678, 0.0
      %v851 = vmax.f32 %v727, 0.0
      %v852 = vmax.f32 %v729, 0.0
      %v853 = vmax.f32 %v778, 0.0
      %v854 = vmax.f32 %v780, 0.0
      %v855 = vmax.f32 %v829, 0.0
      %v856 = vmax.f32 %v831, 0.0
      %v857 = vmax.f32 %v578, 0.0
      %v858 = vmax.f32 %v580, 0.0
      %v859 = vmax.f32 %v629, 0.0
      %v860 = vmax.f32 %v631, 0.0
      %v861 = vmax.f32 %v680, 0.0
      %v862 = vmax.f32 %v682, 0.0
      %v863 = vmax.f32 %v731, 0.0
      %v864 = vmax.f32 %v733, 0.0
      %v865 = vmax.f32 %v782, 0.0
      %v866 = vmax.f32 %v784, 0.0
      %v867 = vmax.f32 %v833, 0.0
      %v868 = vmax.f32 %v835, 0.0
      %v869 = vmax.f32 %v584, 0.0
      %v870 = vmax.f32 %v586, 0.0
      %v871 = vmax.f32 %v635, 0.0
      %v872 = vmax.f32 %v637, 0.0
      %v873 = vmax.f32 %v686, 0.0
      %v874 = vmax.f32 %v688, 0.0
      %v875 = vmax.f32 %v737, 0.0
      %v876 = vmax.f32 %v739, 0.0
      %v877 = vmax.f32 %v788, 0.0
      %v878 = vmax.f32 %v790, 0.0
      %v879 = vmax.f32 %v839, 0.0
      %v880 = vmax.f32 %v841, 0.0
      %v881 = vpack.c.bf16 %v857, %v845
      %v882 = vpack.c.bf16 %v858, %v846
      %v883 = vpack.c.bf16 %v859, %v847
      %v884 = vpack.c.bf16 %v860, %v848
      %v885 = vpack.c.bf16 %v861, %v849
      %v886 = vpack.c.bf16 %v862, %v850
      %v887 = vpack.c.bf16 %v863, %v851
      %v888 = vpack.c.bf16 %v864, %v852
      %v889 = vpack.c.bf16 %v865, %v853
      %v890 = vpack.c.bf16 %v866, %v854
      %v891 = vpack.c.bf16 %v867, %v855
      %v892 = vpack.c.bf16 %v868, %v856
      %v893 = vpack.c.bf16 %v869, %v869
      %v894 = vpack.c.bf16 %v870, %v870
      %v895 = vpack.c.bf16 %v871, %v871
      %v896 = vpack.c.bf16 %v872, %v872
      %v897 = vpack.c.bf16 %v873, %v873
      %v898 = vpack.c.bf16 %v874, %v874
      %v899 = vpack.c.bf16 %v875, %v875
      %v900 = vpack.c.bf16 %v876, %v876
      %v901 = vpack.c.bf16 %v877, %v877
      %v902 = vpack.c.bf16 %v878, %v878
      %v903 = vpack.c.bf16 %v879, %v879
      %v904 = vpack.c.bf16 %v880, %v880
      %v905 = vld [vmem:[%s2] sm:$0x1]
      %vm906 = vcmask 138240
      %v908 = vsel %vm906, %v905, 0
      %vm910 = vcmask 1040384
      %v911 = vsel 0, 4294967295, 65535
      %v912 = vsel %vm910, %v911, 0
      %v914 = vand.u32 %v893, %v912
      %v917 = vand.u32 %v894, %v912
      %v920 = vand.u32 %v895, %v912
      %v923 = vand.u32 %v896, %v912
      %v926 = vand.u32 %v897, %v912
      %v929 = vand.u32 %v898, %v912
      %v932 = vand.u32 %v899, %v912
      %v935 = vand.u32 %v900, %v912
      %v938 = vand.u32 %v901, %v912
      %v941 = vand.u32 %v902, %v912
      %v944 = vand.u32 %v903, %v912
      %v947 = vand.u32 %v904, %v912
      %949 = vmatprep.subr.bf16.mxu0 %v882
      %950 = vmatpush1.bf16.msra.mxu0 %v881
      %951 = vmatprep.subr.bf16.mxu0 %v917
      %952 = vmatpush1.bf16.msra.mxu0 %v914
      %953 = vmatprep.subr.bf16.mxu0 0
      %954 = vmatpush1.bf16.msra.mxu0 0
      %955 = vmatprep.subr.bf16.mxu0 0
      %956 = vmatpush1.bf16.msra.mxu0 0
      %957 = vmatprep.subr.bf16.mxu0 0
      %958 = vmatpush1.bf16.msra.mxu0 0
      %959 = vmatprep.subr.bf16.mxu0 0
      %960 = vmatpush1.bf16.msra.mxu0 0
      %961 = vmatprep.subr.bf16.mxu0 0
      %962 = vmatpush1.bf16.msra.mxu0 0
      %963 = vmatprep.subr.bf16.mxu0 0
      %964 = vmatpush1.bf16.msra.mxu0 0
      %965 = vmatprep.subr.bf16.mxu0 0
      %966 = vmatpush1.bf16.msra.mxu0 0
      %967 = vmatprep.subr.bf16.mxu0 0
      %968 = vmatpush1.bf16.msra.mxu0 0
      %969 = vmatprep.subr.bf16.mxu0 0
      %970 = vmatpush1.bf16.msra.mxu0 0
      %971 = vmatprep.subr.bf16.mxu0 0
      %972 = vmatpush1.bf16.msra.mxu0 0
      %973 = vmatprep.subr.bf16.mxu0 0
      %974 = vmatpush1.bf16.msra.mxu0 0
      %975 = vmatprep.subr.bf16.mxu0 0
      %976 = vmatpush1.bf16.msra.mxu0 0
      %977 = vmatprep.subr.bf16.mxu0 0
      %978 = vmatpush1.bf16.msra.mxu0 0
      %979 = vmatprep.subr.bf16.mxu0 0
      %980 = vmatpush1.bf16.msra.mxu0 0
      %981 = vmatprep.mubr.bf16.mxu0 0
      %982 = vmatmul.mubr.bf16.gmra.mrb[0].mxu0 %v908
      %v983 = vpop.f32.mrb[0].mxu0
      %v984 = vadd.f32 0.0, %v983
      %v985 = vpop.f32.mrb[0].mxu0
      %v986 = vadd.f32 0.0, %v985
      %v987 = vpop.f32.mrb[0].mxu0
      %v988 = vpop.f32.mrb[0].mxu0
      %989 = vdwg.mxu0
      %990 = vmatprep.subr.bf16.mxu0 %v884
      %991 = vmatpush1.bf16.msra.mxu0 %v883
      %992 = vmatprep.subr.bf16.mxu0 %v923
      %993 = vmatpush1.bf16.msra.mxu0 %v920
      %994 = vmatprep.subr.bf16.mxu0 0
      %995 = vmatpush1.bf16.msra.mxu0 0
      %996 = vmatprep.subr.bf16.mxu0 0
      %997 = vmatpush1.bf16.msra.mxu0 0
      %998 = vmatprep.subr.bf16.mxu0 0
      %999 = vmatpush1.bf16.msra.mxu0 0
      %1000 = vmatprep.subr.bf16.mxu0 0
      %1001 = vmatpush1.bf16.msra.mxu0 0
      %1002 = vmatprep.subr.bf16.mxu0 0
      %1003 = vmatpush1.bf16.msra.mxu0 0
      %1004 = vmatprep.subr.bf16.mxu0 0
      %1005 = vmatpush1.bf16.msra.mxu0 0
      %1006 = vmatprep.subr.bf16.mxu0 0
      %1007 = vmatpush1.bf16.msra.mxu0 0
      %1008 = vmatprep.subr.bf16.mxu0 0
      %1009 = vmatpush1.bf16.msra.mxu0 0
      %1010 = vmatprep.subr.bf16.mxu0 0
      %1011 = vmatpush1.bf16.msra.mxu0 0
      %1012 = vmatprep.subr.bf16.mxu0 0
      %1013 = vmatpush1.bf16.msra.mxu0 0
      %1014 = vmatprep.subr.bf16.mxu0 0
      %1015 = vmatpush1.bf16.msra.mxu0 0
      %1016 = vmatprep.subr.bf16.mxu0 0
      %1017 = vmatpush1.bf16.msra.mxu0 0
      %1018 = vmatprep.subr.bf16.mxu0 0
      %1019 = vmatpush1.bf16.msra.mxu0 0
      %1020 = vmatprep.subr.bf16.mxu0 0
      %1021 = vmatpush1.bf16.msra.mxu0 0
      %1022 = vmatprep.mubr.bf16.mxu0 0
      %1023 = vmatmul.mubr.bf16.gmra.mrb[0].mxu0 %v908
      %v1024 = vpop.f32.mrb[0].mxu0
      %v1025 = vadd.f32 0.0, %v1024
      %v1026 = vpop.f32.mrb[0].mxu0
      %v1027 = vadd.f32 0.0, %v1026
      %v1028 = vpop.f32.mrb[0].mxu0
      %v1029 = vpop.f32.mrb[0].mxu0
      %1030 = vdwg.mxu0
      %1031 = vmatprep.subr.bf16.mxu0 %v886
      %1032 = vmatpush1.bf16.msra.mxu0 %v885
      %1033 = vmatprep.subr.bf16.mxu0 %v929
      %1034 = vmatpush1.bf16.msra.mxu0 %v926
      %1035 = vmatprep.subr.bf16.mxu0 0
      %1036 = vmatpush1.bf16.msra.mxu0 0
      %1037 = vmatprep.subr.bf16.mxu0 0
      %1038 = vmatpush1.bf16.msra.mxu0 0
      %1039 = vmatprep.subr.bf16.mxu0 0
      %1040 = vmatpush1.bf16.msra.mxu0 0
      %1041 = vmatprep.subr.bf16.mxu0 0
      %1042 = vmatpush1.bf16.msra.mxu0 0
      %1043 = vmatprep.subr.bf16.mxu0 0
      %1044 = vmatpush1.bf16.msra.mxu0 0
      %1045 = vmatprep.subr.bf16.mxu0 0
      %1046 = vmatpush1.bf16.msra.mxu0 0
      %1047 = vmatprep.subr.bf16.mxu0 0
      %1048 = vmatpush1.bf16.msra.mxu0 0
      %1049 = vmatprep.subr.bf16.mxu0 0
      %1050 = vmatpush1.bf16.msra.mxu0 0
      %1051 = vmatprep.subr.bf16.mxu0 0
      %1052 = vmatpush1.bf16.msra.mxu0 0
      %1053 = vmatprep.subr.bf16.mxu0 0
      %1054 = vmatpush1.bf16.msra.mxu0 0
      %1055 = vmatprep.subr.bf16.mxu0 0
      %1056 = vmatpush1.bf16.msra.mxu0 0
      %1057 = vmatprep.subr.bf16.mxu0 0
      %1058 = vmatpush1.bf16.msra.mxu0 0
      %1059 = vmatprep.subr.bf16.mxu0 0
      %1060 = vmatpush1.bf16.msra.mxu0 0
      %1061 = vmatprep.subr.bf16.mxu0 0
      %1062 = vmatpush1.bf16.msra.mxu0 0
      %1063 = vmatprep.mubr.bf16.mxu0 0
      %1064 = vmatmul.mubr.bf16.gmra.mrb[0].mxu0 %v908
      %v1065 = vpop.f32.mrb[0].mxu0
      %v1066 = vadd.f32 0.0, %v1065
      %v1067 = vpop.f32.mrb[0].mxu0
      %v1068 = vadd.f32 0.0, %v1067
      %v1069 = vpop.f32.mrb[0].mxu0
      %v1070 = vpop.f32.mrb[0].mxu0
      %1071 = vdwg.mxu0
      %1072 = vmatprep.subr.bf16.mxu0 %v888
      %1073 = vmatpush1.bf16.msra.mxu0 %v887
      %1074 = vmatprep.subr.bf16.mxu0 %v935
      %1075 = vmatpush1.bf16.msra.mxu0 %v932
      %1076 = vmatprep.subr.bf16.mxu0 0
      %1077 = vmatpush1.bf16.msra.mxu0 0
      %1078 = vmatprep.subr.bf16.mxu0 0
      %1079 = vmatpush1.bf16.msra.mxu0 0
      %1080 = vmatprep.subr.bf16.mxu0 0
      %1081 = vmatpush1.bf16.msra.mxu0 0
      %1082 = vmatprep.subr.bf16.mxu0 0
      %1083 = vmatpush1.bf16.msra.mxu0 0
      %1084 = vmatprep.subr.bf16.mxu0 0
      %1085 = vmatpush1.bf16.msra.mxu0 0
      %1086 = vmatprep.subr.bf16.mxu0 0
      %1087 = vmatpush1.bf16.msra.mxu0 0
      %1088 = vmatprep.subr.bf16.mxu0 0
      %1089 = vmatpush1.bf16.msra.mxu0 0
      %1090 = vmatprep.subr.bf16.mxu0 0
      %1091 = vmatpush1.bf16.msra.mxu0 0
      %1092 = vmatprep.subr.bf16.mxu0 0
      %1093 = vmatpush1.bf16.msra.mxu0 0
      %1094 = vmatprep.subr.bf16.mxu0 0
      %1095 = vmatpush1.bf16.msra.mxu0 0
      %1096 = vmatprep.subr.bf16.mxu0 0
      %1097 = vmatpush1.bf16.msra.mxu0 0
      %1098 = vmatprep.subr.bf16.mxu0 0
      %1099 = vmatpush1.bf16.msra.mxu0 0
      %1100 = vmatprep.subr.bf16.mxu0 0
      %1101 = vmatpush1.bf16.msra.mxu0 0
      %1102 = vmatprep.subr.bf16.mxu0 0
      %1103 = vmatpush1.bf16.msra.mxu0 0
      %1104 = vmatprep.mubr.bf16.mxu0 0
      %1105 = vmatmul.mubr.bf16.gmra.mrb[0].mxu0 %v908
      %v1106 = vpop.f32.mrb[0].mxu0
      %v1107 = vadd.f32 0.0, %v1106
      %v1108 = vpop.f32.mrb[0].mxu0
      %v1109 = vadd.f32 0.0, %v1108
      %v1110 = vpop.f32.mrb[0].mxu0
      %v1111 = vpop.f32.mrb[0].mxu0
      %1112 = vdwg.mxu0
      %1113 = vmatprep.subr.bf16.mxu0 %v890
      %1114 = vmatpush1.bf16.msra.mxu0 %v889
      %1115 = vmatprep.subr.bf16.mxu0 %v941
      %1116 = vmatpush1.bf16.msra.mxu0 %v938
      %1117 = vmatprep.subr.bf16.mxu0 0
      %1118 = vmatpush1.bf16.msra.mxu0 0
      %1119 = vmatprep.subr.bf16.mxu0 0
      %1120 = vmatpush1.bf16.msra.mxu0 0
      %1121 = vmatprep.subr.bf16.mxu0 0
      %1122 = vmatpush1.bf16.msra.mxu0 0
      %1123 = vmatprep.subr.bf16.mxu0 0
      %1124 = vmatpush1.bf16.msra.mxu0 0
      %1125 = vmatprep.subr.bf16.mxu0 0
      %1126 = vmatpush1.bf16.msra.mxu0 0
      %1127 = vmatprep.subr.bf16.mxu0 0
      %1128 = vmatpush1.bf16.msra.mxu0 0
      %1129 = vmatprep.subr.bf16.mxu0 0
      %1130 = vmatpush1.bf16.msra.mxu0 0
      %1131 = vmatprep.subr.bf16.mxu0 0
      %1132 = vmatpush1.bf16.msra.mxu0 0
      %1133 = vmatprep.subr.bf16.mxu0 0
      %1134 = vmatpush1.bf16.msra.mxu0 0
      %1135 = vmatprep.subr.bf16.mxu0 0
      %1136 = vmatpush1.bf16.msra.mxu0 0
      %1137 = vmatprep.subr.bf16.mxu0 0
      %1138 = vmatpush1.bf16.msra.mxu0 0
      %1139 = vmatprep.subr.bf16.mxu0 0
      %1140 = vmatpush1.bf16.msra.mxu0 0
      %1141 = vmatprep.subr.bf16.mxu0 0
      %1142 = vmatpush1.bf16.msra.mxu0 0
      %1143 = vmatprep.subr.bf16.mxu0 0
      %1144 = vmatpush1.bf16.msra.mxu0 0
      %1145 = vmatprep.mubr.bf16.mxu0 0
      %1146 = vmatmul.mubr.bf16.gmra.mrb[0].mxu0 %v908
      %v1147 = vpop.f32.mrb[0].mxu0
      %v1148 = vadd.f32 0.0, %v1147
      %v1149 = vpop.f32.mrb[0].mxu0
      %v1150 = vadd.f32 0.0, %v1149
      %v1151 = vpop.f32.mrb[0].mxu0
      %v1152 = vpop.f32.mrb[0].mxu0
      %1153 = vdwg.mxu0
      %1154 = vmatprep.subr.bf16.mxu0 %v892
      %1155 = vmatpush1.bf16.msra.mxu0 %v891
      %1156 = vmatprep.subr.bf16.mxu0 %v947
      %1157 = vmatpush1.bf16.msra.mxu0 %v944
      %1158 = vmatprep.subr.bf16.mxu0 0
      %1159 = vmatpush1.bf16.msra.mxu0 0
      %1160 = vmatprep.subr.bf16.mxu0 0
      %1161 = vmatpush1.bf16.msra.mxu0 0
      %1162 = vmatprep.subr.bf16.mxu0 0
      %1163 = vmatpush1.bf16.msra.mxu0 0
      %1164 = vmatprep.subr.bf16.mxu0 0
      %1165 = vmatpush1.bf16.msra.mxu0 0
      %1166 = vmatprep.subr.bf16.mxu0 0
      %1167 = vmatpush1.bf16.msra.mxu0 0
      %1168 = vmatprep.subr.bf16.mxu0 0
      %1169 = vmatpush1.bf16.msra.mxu0 0
      %1170 = vmatprep.subr.bf16.mxu0 0
      %1171 = vmatpush1.bf16.msra.mxu0 0
      %1172 = vmatprep.subr.bf16.mxu0 0
      %1173 = vmatpush1.bf16.msra.mxu0 0
      %1174 = vmatprep.subr.bf16.mxu0 0
      %1175 = vmatpush1.bf16.msra.mxu0 0
      %1176 = vmatprep.subr.bf16.mxu0 0
      %1177 = vmatpush1.bf16.msra.mxu0 0
      %1178 = vmatprep.subr.bf16.mxu0 0
      %1179 = vmatpush1.bf16.msra.mxu0 0
      %1180 = vmatprep.subr.bf16.mxu0 0
      %1181 = vmatpush1.bf16.msra.mxu0 0
      %1182 = vmatprep.subr.bf16.mxu0 0
      %1183 = vmatpush1.bf16.msra.mxu0 0
      %1184 = vmatprep.subr.bf16.mxu0 0
      %1185 = vmatpush1.bf16.msra.mxu0 0
      %1186 = vmatprep.mubr.bf16.mxu0 0
      %1187 = vmatmul.mubr.bf16.gmra.mrb[0].mxu0 %v908
      %v1188 = vpop.f32.mrb[0].mxu0
      %v1189 = vadd.f32 0.0, %v1188
      %v1190 = vpop.f32.mrb[0].mxu0
      %v1191 = vadd.f32 0.0, %v1190
      %v1192 = vpop.f32.mrb[0].mxu0
      %v1193 = vpop.f32.mrb[0].mxu0
      %1194 = vdwg.mxu0
      %v1207 = vcombine.low %v984, %v986
      %v1208 = vcombine.low %v1025, %v1027
      %v1209 = vcombine.low %v1066, %v1068
      %v1210 = vcombine.low %v1107, %v1109
      %v1212 = vunpack.c.l.s4 1966171168
      %v1213 = vunpack.c.0.s8 %v1212
      %v1214 = vlaneseq
      %v1215 = vshrl.u32 %v1214, 7
      %v1216 = vsub.s32 %v1213, %v1215
      %v1217 = vrot.slane %v1207, %v1216
      %v1219 = vunpack.c.l.s4 1966171168
      %v1220 = vunpack.c.0.s8 %v1219
      %v1221 = vlaneseq
      %v1222 = vshrl.u32 %v1221, 7
      %v1223 = vsub.s32 %v1220, %v1222
      %v1224 = vrot.slane %v1208, %v1223
      %v1226 = vunpack.c.l.s4 1966171168
      %v1227 = vunpack.c.0.s8 %v1226
      %v1228 = vlaneseq
      %v1229 = vshrl.u32 %v1228, 7
      %v1230 = vsub.s32 %v1227, %v1229
      %v1231 = vrot.slane %v1209, %v1230
      %v1233 = vunpack.c.l.s4 1966171168
      %v1234 = vunpack.c.0.s8 %v1233
      %v1235 = vlaneseq
      %v1236 = vshrl.u32 %v1235, 7
      %v1237 = vsub.s32 %v1234, %v1236
      %v1238 = vrot.slane %v1210, %v1237
      %v1239 = vcombine.low %v1217, %v1224
      %v1240 = vcombine.low %v1231, %v1238
      %v1242 = vunpack.c.l.s4 1966171168
      %v1243 = vunpack.c.0.s8 %v1242
      %v1244 = vlaneseq
      %v1245 = vshrl.u32 %v1244, 7
      %v1246 = vsub.s32 %v1243, %v1245
      %v1247 = vrot.slane %v1239, %v1246
      %v1249 = vunpack.c.l.s4 1966171168
      %v1250 = vunpack.c.0.s8 %v1249
      %v1251 = vlaneseq
      %v1252 = vshrl.u32 %v1251, 7
      %v1253 = vsub.s32 %v1250, %v1252
      %v1254 = vrot.slane %v1240, %v1253
      %v1255 = vcombine.low %v1247, %v1254
      %v1256 = vcombine.low %v1148, %v1150
      %v1257 = vcombine.low %v1189, %v1191
      %v1259 = vunpack.c.l.s4 1966171168
      %v1260 = vunpack.c.0.s8 %v1259
      %v1261 = vlaneseq
      %v1262 = vshrl.u32 %v1261, 7
      %v1263 = vsub.s32 %v1260, %v1262
      %v1264 = vrot.slane %v1256, %v1263
      %v1266 = vunpack.c.l.s4 1966171168
      %v1267 = vunpack.c.0.s8 %v1266
      %v1268 = vlaneseq
      %v1269 = vshrl.u32 %v1268, 7
      %v1270 = vsub.s32 %v1267, %v1269
      %v1271 = vrot.slane %v1257, %v1270
      %v1272 = vcombine.low %v1264, %v1271
      %v1274 = vunpack.c.l.s4 1966171168
      %v1275 = vunpack.c.0.s8 %v1274
      %v1276 = vlaneseq
      %v1277 = vshrl.u32 %v1276, 7
      %v1278 = vsub.s32 %v1275, %v1277
      %v1279 = vrot.slane %v1272, %v1278
      %1282 = vst [vmem:[%s206] sm:$0xff] %v1255
      %v1283 = vlaneseq
      %vm1284 = vcmp.ge.s32.totalorder %v1283, 0
      %vm1285 = vcmp.lt.s32.totalorder %v1283, 512
      %vm1286 = vmand %vm1284, %vm1285
      %1287 = vst.msk [vmem:[%s206 + $0x8] sm:$0xf] %vm1286, %v1279
      %v1288 = vrot.slane %v984, 1
      %v1289 = vrot.slane %v986, 1
      %v1290 = vrot.slane %v1025, 1
      %v1291 = vrot.slane %v1027, 1
      %v1292 = vrot.slane %v1066, 1
      %v1293 = vrot.slane %v1068, 1
      %v1294 = vrot.slane %v1107, 1
      %v1295 = vrot.slane %v1109, 1
      %v1296 = vrot.slane %v1148, 1
      %v1297 = vrot.slane %v1150, 1
      %v1298 = vrot.slane %v1189, 1
      %v1299 = vrot.slane %v1191, 1
      %v1312 = vadd.f32 %v984, %v1288
      %v1313 = vadd.f32 %v986, %v1289
      %v1314 = vadd.f32 %v1025, %v1290
      %v1315 = vadd.f32 %v1027, %v1291
      %v1316 = vadd.f32 %v1066, %v1292
      %v1317 = vadd.f32 %v1068, %v1293
      %v1318 = vadd.f32 %v1107, %v1294
      %v1319 = vadd.f32 %v1109, %v1295
      %v1320 = vadd.f32 %v1148, %v1296
      %v1321 = vadd.f32 %v1150, %v1297
      %v1322 = vadd.f32 %v1189, %v1298
      %v1323 = vadd.f32 %v1191, %v1299
      %v1324 = vtanh.pop %v1312
      %v1325 = vtanh.pop %v1313
      %v1326 = vtanh.pop %v1314
      %v1327 = vtanh.pop %v1315
      %v1328 = vtanh.pop %v1316
      %v1329 = vtanh.pop %v1317
      %v1330 = vtanh.pop %v1318
      %v1331 = vtanh.pop %v1319
      %v1332 = vtanh.pop %v1320
      %v1333 = vtanh.pop %v1321
      %v1334 = vtanh.pop %v1322
      %v1335 = vtanh.pop %v1323
      %v1348 = vcombine.low %v1324, %v1325
      %v1349 = vcombine.low %v1326, %v1327
      %v1350 = vcombine.low %v1328, %v1329
      %v1351 = vcombine.low %v1330, %v1331
      %v1353 = vunpack.c.l.s4 1966171168
      %v1354 = vunpack.c.0.s8 %v1353
      %v1355 = vlaneseq
      %v1356 = vshrl.u32 %v1355, 7
      %v1357 = vsub.s32 %v1354, %v1356
      %v1358 = vrot.slane %v1348, %v1357
      %v1360 = vunpack.c.l.s4 1966171168
      %v1361 = vunpack.c.0.s8 %v1360
      %v1362 = vlaneseq
      %v1363 = vshrl.u32 %v1362, 7
      %v1364 = vsub.s32 %v1361, %v1363
      %v1365 = vrot.slane %v1349, %v1364
      %v1367 = vunpack.c.l.s4 1966171168
      %v1368 = vunpack.c.0.s8 %v1367
      %v1369 = vlaneseq
      %v1370 = vshrl.u32 %v1369, 7
      %v1371 = vsub.s32 %v1368, %v1370
      %v1372 = vrot.slane %v1350, %v1371
      %v1374 = vunpack.c.l.s4 1966171168
      %v1375 = vunpack.c.0.s8 %v1374
      %v1376 = vlaneseq
      %v1377 = vshrl.u32 %v1376, 7
      %v1378 = vsub.s32 %v1375, %v1377
      %v1379 = vrot.slane %v1351, %v1378
      %v1380 = vcombine.low %v1358, %v1365
      %v1381 = vcombine.low %v1372, %v1379
      %v1383 = vunpack.c.l.s4 1966171168
      %v1384 = vunpack.c.0.s8 %v1383
      %v1385 = vlaneseq
      %v1386 = vshrl.u32 %v1385, 7
      %v1387 = vsub.s32 %v1384, %v1386
      %v1388 = vrot.slane %v1380, %v1387
      %v1390 = vunpack.c.l.s4 1966171168
      %v1391 = vunpack.c.0.s8 %v1390
      %v1392 = vlaneseq
      %v1393 = vshrl.u32 %v1392, 7
      %v1394 = vsub.s32 %v1391, %v1393
      %v1395 = vrot.slane %v1381, %v1394
      %v1396 = vcombine.low %v1388, %v1395
      %v1397 = vcombine.low %v1332, %v1333
      %v1398 = vcombine.low %v1334, %v1335
      %v1400 = vunpack.c.l.s4 1966171168
      %v1401 = vunpack.c.0.s8 %v1400
      %v1402 = vlaneseq
      %v1403 = vshrl.u32 %v1402, 7
      %v1404 = vsub.s32 %v1401, %v1403
      %v1405 = vrot.slane %v1397, %v1404
      %v1407 = vunpack.c.l.s4 1966171168
      %v1408 = vunpack.c.0.s8 %v1407
      %v1409 = vlaneseq
      %v1410 = vshrl.u32 %v1409, 7
      %v1411 = vsub.s32 %v1408, %v1410
      %v1412 = vrot.slane %v1398, %v1411
      %v1413 = vcombine.low %v1405, %v1412
      %v1415 = vunpack.c.l.s4 1966171168
      %v1416 = vunpack.c.0.s8 %v1415
      %v1417 = vlaneseq
      %v1418 = vshrl.u32 %v1417, 7
      %v1419 = vsub.s32 %v1416, %v1418
      %v1420 = vrot.slane %v1413, %v1419
      %1423 = vst [vmem:[%s202] sm:$0xff] %v1396
      %1424 = vst.msk [vmem:[%s202 + $0x8] sm:$0xf] %vm1286, %v1420
      %p1425 = scmp.lt.s32.totalorder %s16, 1
      %s1426 = scalar_select %p1425, %s16, 1
      %s1427 = smul.addr %s1426, 12
      %s1428 = scalar_lea.vmem %s3, %s1427
      %p1429 = scmp.lt.s32.totalorder %s16, 1
      %s1430 = scalar_select %p1429, %s16, 1
      %s1431 = smul.addr %s1430, 12
      %s1432 = scalar_lea.vmem %s4, %s1431
      // Predicated region
      $region33: #{_generate_fake_impl.1} parent=31 // pred_check
        %p1433 = pneg %p102
      $region34: #{_generate_fake_impl.1} parent=31 // pred_check_branch
        %1435 = sbr.rel (%p1433) target = $region36
      $region35: #{_generate_fake_impl.1} parent=31 // pred_region
        _
      $region36: #{_generate_fake_impl.1} parent=31 // pred_fallthru
        _
      // Predicated region
      $region37: #{_generate_fake_impl.1} parent=31 // pred_check
        %p1436 = pneg %p128
      $region38: #{_generate_fake_impl.1} parent=31 // pred_check_branch
        %1438 = sbr.rel (%p1436) target = $region40
      $region39: #{_generate_fake_impl.1} parent=31 // pred_region
        _
      $region40: #{_generate_fake_impl.1} parent=31 // pred_fallthru
        _
    $region32: #{_generate_fake_impl.1} parent=5 // pred_fallthru
      _
    %p1439 = scmp.le.s32.totalorder 2, %s11
    // Predicated region
    $region41: #{_generate_fake_impl.1} parent=5 // pred_check
      %p1440 = pneg %p1439
    $region42: #{_generate_fake_impl.1} parent=5 // pred_check_branch
      %1442 = sbr.rel (%p1440) target = $region44
    $region43: #{_generate_fake_impl.1} parent=5 // pred_region
      %s1443 = ssub.s32 %s11, 2
      // Predicated region
      $region45: #{_generate_fake_impl.1} parent=43 // pred_check
        %p1444 = pneg %p108
      $region46: #{_generate_fake_impl.1} parent=43 // pred_check_branch
        %1446 = sbr.rel (%p1444) target = $region48
      $region47: #{_generate_fake_impl.1} parent=43 // pred_region
        %p1447 = scmp.lt.s32.totalorder %s17, 1
        %s1448 = scalar_select %p1447, %s17, 1
        %s1449 = smul.addr %s1448, 12
        %s1450 = scalar_lea.vmem %s3, %s1449
      $region48: #{_generate_fake_impl.1} parent=43 // pred_fallthru
        _
      // Predicated region
      $region49: #{_generate_fake_impl.1} parent=43 // pred_check
        %p1451 = pneg %p134
      $region50: #{_generate_fake_impl.1} parent=43 // pred_check_branch
        %1453 = sbr.rel (%p1451) target = $region52
      $region51: #{_generate_fake_impl.1} parent=43 // pred_region
        %p1454 = scmp.lt.s32.totalorder %s17, 1
        %s1455 = scalar_select %p1454, %s17, 1
        %s1456 = smul.addr %s1455, 12
        %s1457 = scalar_lea.vmem %s4, %s1456
      $region52: #{_generate_fake_impl.1} parent=43 // pred_fallthru
        _
    $region44: #{_generate_fake_impl.1} parent=5 // pred_fallthru
      _
  $region6: #{_generate_fake_impl.1} parent=0 // loop_footer
    %s15 = sadd.s32 1, %s11
  $region7: #{_generate_fake_impl.1} parent=0 // loop_footer_branch
    %10 = sbr.rel target = $region3
  $region8: #{_generate_fake_impl.1} parent=0 // loop_exit
    _

</llo_original>
